<compile_context>
chip_gen: v5e
topology: v5e:2x2
jax: 0.10.0
libtpu: 0.0.40
codegen_flags: <defaults>
</compile_context>

<pallas_src>
import functools

import jax
import jax.numpy as jnp
from jax.experimental import pallas as pl
from jax.experimental.pallas import tpu as pltpu


def _round_up(x, m):
    return (x + m - 1) // m * m


def _vmem_budget_bytes():
    """~80% of per-core VMEM (64 MiB on v7x, 128 MiB on v5e/v6e), with a
    conservative fallback if the hardware query is unavailable."""
    cap = None
    try:
        info = pltpu.get_tpu_info()
        cap = getattr(info, "vmem_capacity_bytes", None)
    except Exception:
        cap = None
    if not cap:
        cap = 64 << 20
    return int(cap * 0.8)


def _pick_tile(n, cap, aligns=(16, 8)):
    """Largest divisor t of n with t <= cap and t % align == 0 (preferred
    alignment first); falls back to the full extent n (always a legal block)."""
    cap = max(1, min(n, int(cap)))
    for align in aligns:
        for t in range(cap, align - 1, -1):
            if n % t == 0 and t % align == 0:
                return t
    # TODO(synk): heights with no 8-aligned divisor fall back to TH = H; pad H
    #             on the host if that ever exceeds the VMEM budget.
    return n


def _window_max(x, k, axis):
    """Running max over a length-k forward window along `axis` via prefix
    doubling:  y[i] = max(x[i], ..., x[i + k - 1]).

    Uses ~ceil(log2 k) (+1 if k is not a power of two) pltpu.roll ops instead
    of k - 1 shifted operands.  Positions within k - 1 of the end of the axis
    receive wrapped values and must not be consumed by the caller (the caller
    keeps only the first `extent - (k - 1)` positions).
    pltpu.roll follows jnp.roll semantics, so a left shift by s is roll(n - s).
    """
    if k <= 1:
        return x
    n = x.shape[axis]
    span = 1
    while 2 * span <= k:
        x = jnp.maximum(x, pltpu.roll(x, n - span, axis))   # shift left by span
        span *= 2
    if span < k:
        x = jnp.maximum(x, pltpu.roll(x, n - (k - span), axis))
    return x


def _remove_anything_kernel(comb_ref, frame_ref, fill_ref,
                            mask_out_ref, frame_out_ref,
                            *, K, TH, HALO, C, WP):
    """One grid step == one frame x TH output rows.

    comb_ref      : (1, H + HALO, WM)  zero-padded combined mask (bf16, 0/1)
    frame_ref     : (1, C, TH, WP)     input frame row tile (lane-dense width)
    fill_ref      : (1, C, TH, WP)     inpainter fill row tile
    mask_out_ref  : (1, TH, WP)        dilated combined mask tile
    frame_out_ref : (1, C, TH, WP)     composited frame tile
    """
    align = TH & (-TH)                       # largest power of two dividing TH
    h0 = pl.multiple_of(pl.program_id(1) * TH, align)

    # --- separable dilation: one aligned halo-slab load, then log-time
    # running maxes over rows (sublane axis) and columns (lane axis). --------
    slab = comb_ref[0, pl.ds(h0, TH + HALO), :].astype(jnp.float32)
    rows = _window_max(slab, K, axis=0)[:TH, :]
    dil = _window_max(rows, K, axis=1)[:, :WP]

    mask_out_ref[0] = dil.astype(mask_out_ref.dtype)

    # --- compositing: exact select for a binary mask; per-channel so live
    # values stay at one (TH, WP) tile each. ---------------------------------
    keep = dil > 0.0
    for c in range(C):
        frame_out_ref[0, c] = jnp.where(keep, fill_ref[0, c], frame_ref[0, c])


def remove_anything_video_forward(mask0, mask1, frames, fill,
                                  dilate_kernel_size=10,
                                  mask_dtype=jnp.bfloat16,
                                  single_buffer_mask=None):
    """Pallas-backed per-frame mask combine + dilate + inpaint-composite.

    mask0, mask1 : (T, H, W)     raw per-object masks (>0 == foreground)
    frames       : (T, C, H, W)  input video frames (NCHW); f32 or bf16
    fill         : (T, C, H, W)  inpainter output frames, same dtype as frames
    returns (composited_frames (T, C, H, W), dilated_masks (T, H, W))
    """
    T, H, W = mask0.shape
    Tf, C, Hf, Wf = frames.shape
    assert (Tf, Hf, Wf) == (T, H, W) and fill.shape == frames.shape
    assert fill.dtype == frames.dtype
    K = int(dilate_kernel_size)
    assert K >= 1

    a = K // 2                              # cv2.dilate anchor = kernel centre
    HALO = _round_up(K - 1, 8)              # bottom halo rounded so the slab
                                            # height (TH + HALO) is 8-aligned
    WP = max(128, _round_up(W, 128))        # lane-dense frame / output width
    WM = max(128, _round_up(W + K - 1, 128))  # lane-dense mask width (+ halo)
    # Wrap safety of the single-direction rolls in _window_max:
    assert WM >= W + K - 1 and HALO >= K - 1

    # ---- host-side prep (cheap vs. the frame streams) ----------------------
    #  * combine the two object masks once -> one bf16 mask stream,
    #  * zero-pad with the dilation halo (zero is the identity for max),
    #  * pad frames / fill to a lane-dense width (no-op when W % 128 == 0).
    comb = jnp.logical_or(mask0 > 0, mask1 > 0).astype(jnp.bfloat16)
    combp = jnp.pad(comb, ((0, 0), (a, HALO - a), (a, WM - W - a)))
    if WP != W:
        pad_w = ((0, 0), (0, 0), (0, 0), (0, WP - W))
        framesp = jnp.pad(frames, pad_w)
        fillp = jnp.pad(fill, pad_w)
    else:
        framesp, fillp = frames, fill

    # ---- tile selection from the per-generation VMEM budget ----------------
    fbytes = jnp.dtype(frames.dtype).itemsize
    mbytes = jnp.dtype(mask_dtype).itemsize
    budget = _vmem_budget_bytes()
    comb_block = (H + HALO) * WM * 2        # bf16 full-height mask block

    if single_buffer_mask is None:
        # Only drop the mask double-buffer when it would eat a big slice of
        # VMEM (large frames on v7x); otherwise keep it pipelined.
        single_buffer_mask = 2 * comb_block > budget // 3
    comb_bufs = 1 if single_buffer_mask else 2

    per_row = (2 * 3 * C * WP * fbytes      # frame + fill + out, double-buffered
               + 2 * WP * mbytes            # mask out, double-buffered
               + 4 * WM * 4)                # in-kernel f32 temporaries (slab/dil)
    avail = budget - comb_bufs * comb_block - (4 << 20)
    th_cap = max(8, avail // per_row)
    TH = _pick_tile(H, th_cap, aligns=(16, 8) if fbytes == 2 else (8,))

    grid = (T, H // TH)
    requirement = comb_bufs * comb_block + per_row * TH + (8 << 20)
    vmem_limit = int(max(32 << 20, min(requirement, budget)))

    comb_spec_kwargs = {}
    if single_buffer_mask:
        comb_spec_kwargs["pipeline_mode"] = pl.Buffered(1)

    kernel = functools.partial(_remove_anything_kernel,
                               K=K, TH=TH, HALO=HALO, C=C, WP=WP)

    out_mask, out_frames = pl.pallas_call(
        kernel,
        out_shape=(
            jax.ShapeDtypeStruct((T, H, WP), mask_dtype),
            jax.ShapeDtypeStruct((T, C, H, WP), frames.dtype),
        ),
        grid=grid,
        in_specs=[
            # Full padded mask per frame: the block index is constant over the
            # inner row axis, so it is DMA'd once per frame; each row tile's
            # halo slab is sliced in-kernel with pl.ds.
            pl.BlockSpec((1, H + HALO, WM), lambda t, h: (t, 0, 0),
                         **comb_spec_kwargs),
            pl.BlockSpec((1, C, TH, WP), lambda t, h: (t, 0, h, 0)),
            pl.BlockSpec((1, C, TH, WP), lambda t, h: (t, 0, h, 0)),
        ],
        out_specs=(
            pl.BlockSpec((1, TH, WP), lambda t, h: (t, h, 0)),
            pl.BlockSpec((1, C, TH, WP), lambda t, h: (t, 0, h, 0)),
        ),
        compiler_params=pltpu.CompilerParams(
            # Only the (leading) frame axis is "parallel": on v7x the megacore
            # split lands on frames, keeping each core's mask fetches disjoint.
            dimension_semantics=("parallel", "arbitrary"),
            vmem_limit_bytes=vmem_limit),
    )(combp, framesp, fillp)

    # Slice the lane pad off (no-op when W is already a multiple of 128).
    return out_frames[..., :W], out_mask[..., :W]


def _reference(mask0, mask1, frames, fill, K):
    """Pure-JAX reference: cv2.dilate (KxK ones, centre anchor) + composite."""
    pad_lo = K // 2
    pad_hi = K - 1 - pad_lo
    comb = jnp.logical_or(mask0 > 0, mask1 > 0).astype(jnp.float32)
    combp = jnp.pad(comb, ((0, 0), (pad_lo, pad_hi), (pad_lo, pad_hi)))
    T, H, W = mask0.shape
    dil = jnp.zeros((T, H, W), jnp.float32)
    for i in range(K):
        for j in range(K):
            dil = jnp.maximum(dil, combp[:, i:i + H, j:j + W])
    out = jnp.where(dil[:, None, :, :] > 0, fill, frames)
    return out, dil


if __name__ == "__main__":
    # Small deterministic synthetic inputs consistent with the forward():
    # a short clip of T frames, RGB, 16x16 spatial, dilation kernel K=5/10.
    T, C, H, W = 4, 3, 16, 16
    K = 5

    key = jax.random.PRNGKey(0)
    k0, k1, k2, k3 = jax.random.split(key, 4)

    # Raw per-object masks (what SAM2-video would have produced, grayscale>0).
    mask0 = (jax.random.uniform(k0, (T, H, W)) > 0.9).astype(jnp.float32) * 255.0
    mask1 = (jax.random.uniform(k1, (T, H, W)) > 0.9).astype(jnp.float32) * 255.0
    # Input video frames and synthetic inpainter ("STTN") fill frames.
    frames = jax.random.uniform(k2, (T, C, H, W), dtype=jnp.float32)
    fill = jax.random.uniform(k3, (T, C, H, W), dtype=jnp.float32)

    out_frames, out_masks = remove_anything_video_forward(
        mask0, mask1, frames, fill, dilate_kernel_size=K,
        mask_dtype=jnp.float32)
    jax.block_until_ready(out_frames)
    jax.block_until_ready(out_masks)

    ref_frames, ref_masks = _reference(mask0, mask1, frames, fill, K)
    assert jnp.array_equal(out_masks, ref_masks), "mask mismatch (K=5)"
    assert jnp.allclose(out_frames, ref_frames, atol=1e-6), "frame mismatch (K=5)"

    # Even dilation kernel (the module's default is 10): asymmetric anchor.
    out_frames10, out_masks10 = remove_anything_video_forward(
        mask0, mask1, frames, fill, dilate_kernel_size=10,
        mask_dtype=jnp.float32)
    jax.block_until_ready(out_frames10)
    ref_frames10, ref_masks10 = _reference(mask0, mask1, frames, fill, 10)
    assert jnp.array_equal(out_masks10, ref_masks10), "mask mismatch (K=10)"
    assert jnp.allclose(out_frames10, ref_frames10, atol=1e-6), "frame mismatch (K=10)"

    # bf16 production path: bf16 frames/fill + bf16 mask output.  The
    # composite is a pure select between bf16 values, so it stays exact.
    frames16 = frames.astype(jnp.bfloat16)
    fill16 = fill.astype(jnp.bfloat16)
    out_frames16, out_masks16 = remove_anything_video_forward(
        mask0, mask1, frames16, fill16, dilate_kernel_size=K)
    jax.block_until_ready(out_frames16)
    ref_frames16, _ = _reference(mask0, mask1, frames16, fill16, K)
    assert jnp.array_equal(out_frames16, ref_frames16), "bf16 frame mismatch"
    assert jnp.array_equal(out_masks16.astype(jnp.float32), ref_masks), \
        "bf16 mask mismatch"

    print("KERNEL_OK")
</pallas_src>

<mosaic_0001>
module attributes {stable_mosaic.version = 11 : i64} {
  func.func @_remove_anything_kernel(%arg0: i32, %arg1: i32, %arg2: memref<1x24x128xbf16, #tpu.memory_space<vmem>>, %arg3: memref<1x3x16x128xf32, #tpu.memory_space<vmem>>, %arg4: memref<1x3x16x128xf32, #tpu.memory_space<vmem>>, %arg5: memref<1x16x128xf32, #tpu.memory_space<vmem>>, %arg6: memref<1x3x16x128xf32, #tpu.memory_space<vmem>>) attributes {dimension_semantics = [#tpu.dimension_semantics<parallel>, #tpu.dimension_semantics<arbitrary>], iteration_bounds = array<i64: 4, 1>, scalar_prefetch = 0 : i64, scratch_operands = 0 : i64, tpu.core_type = #tpu.core_type<tc>, window_params = [{transform_indices = @transform_0, window_bounds = array<i64: 1, 24, 128>}, {transform_indices = @transform_1, window_bounds = array<i64: 1, 3, 16, 128>}, {transform_indices = @transform_2, window_bounds = array<i64: 1, 3, 16, 128>}, {transform_indices = @transform_3, window_bounds = array<i64: 1, 16, 128>}, {transform_indices = @transform_4, window_bounds = array<i64: 1, 3, 16, 128>}]} {
    %c16_i32 = arith.constant 16 : i32
    %0 = arith.muli %arg1, %c16_i32 : i32
    %1 = tpu.assume_multiple %0, 16 : i32
    %c0 = arith.constant 0 : index
    %2 = arith.index_cast %1 : i32 to index
    %c0_0 = arith.constant 0 : index
    %3 = vector.load %arg2[%c0, %2, %c0_0] : memref<1x24x128xbf16, #tpu.memory_space<vmem>>, vector<1x24x128xbf16>
    %4 = vector.shape_cast %3 : vector<1x24x128xbf16> to vector<24x128xbf16>
    %5 = arith.extf %4 : vector<24x128xbf16> to vector<24x128xf32>
    %c23_i32 = arith.constant 23 : i32
    %6 = tpu.dynamic_rotate %5 by %c23_i32 dim 0 : vector<24x128xf32>, i32 -> vector<24x128xf32>
    %7 = arith.maximumf %5, %6 : vector<24x128xf32>
    %c22_i32 = arith.constant 22 : i32
    %8 = tpu.dynamic_rotate %7 by %c22_i32 dim 0 : vector<24x128xf32>, i32 -> vector<24x128xf32>
    %9 = arith.maximumf %7, %8 : vector<24x128xf32>
    %c23_i32_1 = arith.constant 23 : i32
    %10 = tpu.dynamic_rotate %9 by %c23_i32_1 dim 0 : vector<24x128xf32>, i32 -> vector<24x128xf32>
    %11 = arith.maximumf %9, %10 : vector<24x128xf32>
    %12 = vector.extract_strided_slice %11 {offsets = [0, 0], sizes = [16, 128], strides = [1, 1]} : vector<24x128xf32> to vector<16x128xf32>
    %c127_i32 = arith.constant 127 : i32
    %13 = tpu.dynamic_rotate %12 by %c127_i32 dim 1 : vector<16x128xf32>, i32 -> vector<16x128xf32>
    %14 = arith.maximumf %12, %13 : vector<16x128xf32>
    %c126_i32 = arith.constant 126 : i32
    %15 = tpu.dynamic_rotate %14 by %c126_i32 dim 1 : vector<16x128xf32>, i32 -> vector<16x128xf32>
    %16 = arith.maximumf %14, %15 : vector<16x128xf32>
    %c127_i32_2 = arith.constant 127 : i32
    %17 = tpu.dynamic_rotate %16 by %c127_i32_2 dim 1 : vector<16x128xf32>, i32 -> vector<16x128xf32>
    %18 = arith.maximumf %16, %17 : vector<16x128xf32>
    %c0_3 = arith.constant 0 : index
    %c0_4 = arith.constant 0 : index
    %c0_5 = arith.constant 0 : index
    %19 = vector.load %arg5[%c0_3, %c0_4, %c0_5] : memref<1x16x128xf32, #tpu.memory_space<vmem>>, vector<1x16x128xf32>
    %20 = vector.shape_cast %19 : vector<1x16x128xf32> to vector<16x128xf32>
    %21 = vector.shape_cast %18 : vector<16x128xf32> to vector<1x16x128xf32>
    tpu.vector_store %arg5[%c0_3, %c0_4, %c0_5], %21 {strides = array<i32>} : memref<1x16x128xf32, #tpu.memory_space<vmem>>, vector<1x16x128xf32>,
    %cst = arith.constant 0.000000e+00 : f32
    %22 = vector.broadcast %cst : f32 to vector<16x128xf32>
    %23 = arith.cmpf ogt, %18, %22 : vector<16x128xf32>
    %c0_6 = arith.constant 0 : index
    %c0_7 = arith.constant 0 : index
    %c0_8 = arith.constant 0 : index
    %c0_9 = arith.constant 0 : index
    %24 = vector.load %arg4[%c0_6, %c0_7, %c0_8, %c0_9] : memref<1x3x16x128xf32, #tpu.memory_space<vmem>>, vector<1x1x16x128xf32>
    %25 = vector.shape_cast %24 : vector<1x1x16x128xf32> to vector<16x128xf32>
    %c0_10 = arith.constant 0 : index
    %c0_11 = arith.constant 0 : index
    %c0_12 = arith.constant 0 : index
    %c0_13 = arith.constant 0 : index
    %26 = vector.load %arg3[%c0_10, %c0_11, %c0_12, %c0_13] : memref<1x3x16x128xf32, #tpu.memory_space<vmem>>, vector<1x1x16x128xf32>
    %27 = vector.shape_cast %26 : vector<1x1x16x128xf32> to vector<16x128xf32>
    %28 = arith.select %23, %25, %27 : vector<16x128xi1>, vector<16x128xf32>
    %c0_14 = arith.constant 0 : index
    %c0_15 = arith.constant 0 : index
    %c0_16 = arith.constant 0 : index
    %c0_17 = arith.constant 0 : index
    %29 = vector.load %arg6[%c0_14, %c0_15, %c0_16, %c0_17] : memref<1x3x16x128xf32, #tpu.memory_space<vmem>>, vector<1x1x16x128xf32>
    %30 = vector.shape_cast %29 : vector<1x1x16x128xf32> to vector<16x128xf32>
    %31 = vector.shape_cast %28 : vector<16x128xf32> to vector<1x1x16x128xf32>
    tpu.vector_store %arg6[%c0_14, %c0_15, %c0_16, %c0_17], %31 {strides = array<i32>} : memref<1x3x16x128xf32, #tpu.memory_space<vmem>>, vector<1x1x16x128xf32>,
    %c0_18 = arith.constant 0 : index
    %c1 = arith.constant 1 : index
    %c0_19 = arith.constant 0 : index
    %c0_20 = arith.constant 0 : index
    %32 = vector.load %arg4[%c0_18, %c1, %c0_19, %c0_20] : memref<1x3x16x128xf32, #tpu.memory_space<vmem>>, vector<1x1x16x128xf32>
    %33 = vector.shape_cast %32 : vector<1x1x16x128xf32> to vector<16x128xf32>
    %c0_21 = arith.constant 0 : index
    %c1_22 = arith.constant 1 : index
    %c0_23 = arith.constant 0 : index
    %c0_24 = arith.constant 0 : index
    %34 = vector.load %arg3[%c0_21, %c1_22, %c0_23, %c0_24] : memref<1x3x16x128xf32, #tpu.memory_space<vmem>>, vector<1x1x16x128xf32>
    %35 = vector.shape_cast %34 : vector<1x1x16x128xf32> to vector<16x128xf32>
    %36 = arith.select %23, %33, %35 : vector<16x128xi1>, vector<16x128xf32>
    %c0_25 = arith.constant 0 : index
    %c1_26 = arith.constant 1 : index
    %c0_27 = arith.constant 0 : index
    %c0_28 = arith.constant 0 : index
    %37 = vector.load %arg6[%c0_25, %c1_26, %c0_27, %c0_28] : memref<1x3x16x128xf32, #tpu.memory_space<vmem>>, vector<1x1x16x128xf32>
    %38 = vector.shape_cast %37 : vector<1x1x16x128xf32> to vector<16x128xf32>
    %39 = vector.shape_cast %36 : vector<16x128xf32> to vector<1x1x16x128xf32>
    tpu.vector_store %arg6[%c0_25, %c1_26, %c0_27, %c0_28], %39 {strides = array<i32>} : memref<1x3x16x128xf32, #tpu.memory_space<vmem>>, vector<1x1x16x128xf32>,
    %c0_29 = arith.constant 0 : index
    %c2 = arith.constant 2 : index
    %c0_30 = arith.constant 0 : index
    %c0_31 = arith.constant 0 : index
    %40 = vector.load %arg4[%c0_29, %c2, %c0_30, %c0_31] : memref<1x3x16x128xf32, #tpu.memory_space<vmem>>, vector<1x1x16x128xf32>
    %41 = vector.shape_cast %40 : vector<1x1x16x128xf32> to vector<16x128xf32>
    %c0_32 = arith.constant 0 : index
    %c2_33 = arith.constant 2 : index
    %c0_34 = arith.constant 0 : index
    %c0_35 = arith.constant 0 : index
    %42 = vector.load %arg3[%c0_32, %c2_33, %c0_34, %c0_35] : memref<1x3x16x128xf32, #tpu.memory_space<vmem>>, vector<1x1x16x128xf32>
    %43 = vector.shape_cast %42 : vector<1x1x16x128xf32> to vector<16x128xf32>
    %44 = arith.select %23, %41, %43 : vector<16x128xi1>, vector<16x128xf32>
    %c0_36 = arith.constant 0 : index
    %c2_37 = arith.constant 2 : index
    %c0_38 = arith.constant 0 : index
    %c0_39 = arith.constant 0 : index
    %45 = vector.load %arg6[%c0_36, %c2_37, %c0_38, %c0_39] : memref<1x3x16x128xf32, #tpu.memory_space<vmem>>, vector<1x1x16x128xf32>
    %46 = vector.shape_cast %45 : vector<1x1x16x128xf32> to vector<16x128xf32>
    %47 = vector.shape_cast %44 : vector<16x128xf32> to vector<1x1x16x128xf32>
    tpu.vector_store %arg6[%c0_36, %c2_37, %c0_38, %c0_39], %47 {strides = array<i32>} : memref<1x3x16x128xf32, #tpu.memory_space<vmem>>, vector<1x1x16x128xf32>,
    return
  }
  func.func @transform_0(%arg0: i32, %arg1: i32) -> (i32, i32, i32) {
    %c0_i32 = arith.constant 0 : i32
    %c0_i32_0 = arith.constant 0 : i32
    %c0_i32_1 = arith.constant 0 : i32
    return %arg0, %c0_i32, %c0_i32_0 : i32, i32, i32
  }
  func.func @transform_1(%arg0: i32, %arg1: i32) -> (i32, i32, i32, i32) {
    %c0_i32 = arith.constant 0 : i32
    %c0_i32_0 = arith.constant 0 : i32
    %c0_i32_1 = arith.constant 0 : i32
    return %arg0, %c0_i32, %arg1, %c0_i32_0 : i32, i32, i32, i32
  }
  func.func @transform_2(%arg0: i32, %arg1: i32) -> (i32, i32, i32, i32) {
    %c0_i32 = arith.constant 0 : i32
    %c0_i32_0 = arith.constant 0 : i32
    %c0_i32_1 = arith.constant 0 : i32
    return %arg0, %c0_i32, %arg1, %c0_i32_0 : i32, i32, i32, i32
  }
  func.func @transform_3(%arg0: i32, %arg1: i32) -> (i32, i32, i32) {
    %c0_i32 = arith.constant 0 : i32
    %c0_i32_0 = arith.constant 0 : i32
    return %arg0, %arg1, %c0_i32 : i32, i32, i32
  }
  func.func @transform_4(%arg0: i32, %arg1: i32) -> (i32, i32, i32, i32) {
    %c0_i32 = arith.constant 0 : i32
    %c0_i32_0 = arith.constant 0 : i32
    %c0_i32_1 = arith.constant 0 : i32
    return %arg0, %c0_i32, %arg1, %c0_i32_0 : i32, i32, i32, i32
  }
}

</mosaic_0001>

<llo_original>
// kernel: tpu_custom_call.1
$region0: #{tpu_custom_call.1}
  #allocation0 [shape = 'u32[]', space=smem, size = 0x4, offset = 0x4, fixed_abs, tag = 'smem constant byte address 0x4 - core index']
  #allocation1 [shape = 'u32[72,128]{1,0:T(1,128)}', space=vmem, size = 0x9000, scoped, tag = 'internal scratch']
  %s0 = inlined_call_operand.hbm [shape: bf16[4,24,128], index: 0, kind: input, shape index: {}]
  %s1 = inlined_call_operand.hbm [shape: f32[4,3,16,128], index: 1, kind: input, shape index: {}]
  %s2 = inlined_call_operand.hbm [shape: f32[4,3,16,128], index: 2, kind: input, shape index: {}]
  %s3 = inlined_call_operand.hbm [shape: f32[4,16,128], index: 3, kind: output, shape index: {0}]
  %s4 = inlined_call_operand.hbm [shape: f32[4,3,16,128], index: 4, kind: output, shape index: {1}]
  %5 = xla_tuple %s3, %s4
  %s6 = sld [smem:[#allocation0]]
  $region65: #{tpu_custom_call.1} parent=0
    _
  %s8 = ssub.s32 1, %s6
  %s9 = scalar_select 0, %s8, %s6
  $region1: #{tpu_custom_call.1} parent=0
    #allocation2 [shape = 'u8[12288]{0}', space=vmem, size = 0x3000, scoped, tag = 'input window, operand 0']
    #allocation3 [shape = 's32[2]{0}', space=sflag, size = 0x8, scoped, tag = 'scoped memory for tpu_custom_call.1']
    #allocation4 [shape = 's32[2]{0}', space=sflag, size = 0x8, scoped, tag = 'scoped memory for tpu_custom_call.1']
    #allocation5 [shape = 'u8[49152]{0}', space=vmem, size = 0xc000, scoped, tag = 'input window, operand 1']
    #allocation6 [shape = 's32[2]{0}', space=sflag, size = 0x8, scoped, tag = 'scoped memory for tpu_custom_call.1']
    #allocation7 [shape = 'u8[49152]{0}', space=vmem, size = 0xc000, scoped, tag = 'input window, operand 2']
    #allocation8 [shape = 'u8[16384]{0}', space=vmem, size = 0x4000, scoped, tag = 'output window, operand 0']
    #allocation9 [shape = 'u8[49152]{0}', space=vmem, size = 0xc000, scoped, tag = 'output window, operand 1']
    #allocation10 [shape = 's32[2]{0}', space=sflag, size = 0x8, scoped, tag = 'scoped memory for tpu_custom_call.1']
    %10 = vsyncpa [#allocation3], 0
    %s11 = scalar_lea.sflag [#allocation3], 1
    %12 = vsyncpa %s11, 0
    %13 = vsyncpa [#allocation6], 0
    %s14 = scalar_lea.sflag [#allocation6], 1
    %15 = vsyncpa %s14, 0
    %16 = vsyncpa [#allocation4], 0
    %s17 = scalar_lea.sflag [#allocation4], 1
    %18 = vsyncpa %s17, 0
    %19 = vsyncpa [#allocation10], 0
    %s20 = scalar_lea.sflag [#allocation10], 1
    %21 = vsyncpa %s20, 0
    loop: start=0, step=1, limit=6
    $region2: #{tpu_custom_call.1} parent=1 // loop_pre_header
      _
    $region3: #{tpu_custom_call.1} parent=1 // loop_header
      %s23 = sphi 0, %s27
      %p24 = scmp.ge.s32.totalorder %s23, 6
      %s30 = sphi 0, %s42
      %s31 = sphi 0, %s38
      %s32 = sphi 0, %s30
      %s33 = sphi 0, %s31
      %s34 = sphi 0, %s32
      %s35 = sphi 0, %s33
      %s45 = sphi 0, %s47
      %s48 = sphi 0, %s45
      %s49 = sphi 0, %s48
      %s65 = sphi 0, %s49
      %s73 = sphi 0, %s75
      %s76 = sphi 0, %s73
      %s77 = sphi 0, %s76
      %s93 = sphi 0, %s77
      %s101 = sphi 0, %s103
      %s104 = sphi 0, %s101
      %s105 = sphi 0, %s104
      %s121 = sphi 0, %s105
      %s129 = sphi 0, %s131
      %s132 = sphi 0, %s129
      %s133 = sphi 0, %s132
      %s149 = sphi 0, %s133
      %s157 = sphi 0, %s159
      %s160 = sphi 0, %s157
      %s161 = sphi 0, %s160
      %s177 = sphi 0, %s161
    $region4: #{tpu_custom_call.1} parent=1 // loop_header_branch
      %26 = sbr.rel (%p24) target = $region8
    $region5: #{tpu_custom_call.1} parent=1 // loop_body
      %s28 = ssub.s32 %s23, 1
      %s29 = ssub.s32 %s23, 2
      %s36 = sadd.s32 1, %s31
      %p37 = scmp.ge.s32.totalorder %s36, 1
      %s38 = scalar_select %p37, 0, %s36
      %s39 = sadd.s32 1, %s30
      %s40 = scalar_select %p37, %s39, %s30
      %p41 = scmp.ge.s32.totalorder %s40, 4
      %s42 = scalar_select %p41, 0, %s40
      %s43 = ssub.s32 %s30, %s42
      %p44 = scmp.eq.s32.totalorder %s43, 0
      %s46 = sadd.s32 %s45, 1
      %s47 = scalar_select %p44, %s45, %s46
      %p50 = pneg %p44
      %p51 = scmp.eq.s32.totalorder %s23, 3
      %p52 = por %p50, %p51
      %p53 = scmp.ne.s32.totalorder %s45, %s48
      %p54 = scmp.eq.s32.totalorder %s23, 0
      %p55 = por %p53, %p54
      %p56 = scmp.ne.s32.totalorder %s45, %s48
      %p57 = scmp.eq.s32.totalorder %s28, 3
      %p58 = por %p56, %p57
      %p59 = scmp.ne.s32.totalorder %s48, %s49
      %p60 = scmp.eq.s32.totalorder %s28, 0
      %p61 = por %p59, %p60
      %p62 = scmp.ne.s32.totalorder %s48, %s49
      %p63 = scmp.eq.s32.totalorder %s29, 3
      %p64 = por %p62, %p63
      %p66 = scmp.ne.s32.totalorder %s49, %s65
      %p67 = scmp.eq.s32.totalorder %s29, 0
      %p68 = por %p66, %p67
      %s69 = ssub.s32 %s30, %s42
      %s70 = ssub.s32 %s31, %s38
      %s71 = sor.u32 %s69, %s70
      %p72 = scmp.eq.s32.totalorder %s71, 0
      %s74 = sadd.s32 %s73, 1
      %s75 = scalar_select %p72, %s73, %s74
      %p78 = pneg %p72
      %p79 = scmp.eq.s32.totalorder %s23, 3
      %p80 = por %p78, %p79
      %p81 = scmp.ne.s32.totalorder %s73, %s76
      %p82 = scmp.eq.s32.totalorder %s23, 0
      %p83 = por %p81, %p82
      %p84 = scmp.ne.s32.totalorder %s73, %s76
      %p85 = scmp.eq.s32.totalorder %s28, 3
      %p86 = por %p84, %p85
      %p87 = scmp.ne.s32.totalorder %s76, %s77
      %p88 = scmp.eq.s32.totalorder %s28, 0
      %p89 = por %p87, %p88
      %p90 = scmp.ne.s32.totalorder %s76, %s77
      %p91 = scmp.eq.s32.totalorder %s29, 3
      %p92 = por %p90, %p91
      %p94 = scmp.ne.s32.totalorder %s77, %s93
      %p95 = scmp.eq.s32.totalorder %s29, 0
      %p96 = por %p94, %p95
      %s97 = ssub.s32 %s30, %s42
      %s98 = ssub.s32 %s31, %s38
      %s99 = sor.u32 %s97, %s98
      %p100 = scmp.eq.s32.totalorder %s99, 0
      %s102 = sadd.s32 %s101, 1
      %s103 = scalar_select %p100, %s101, %s102
      %p106 = pneg %p100
      %p107 = scmp.eq.s32.totalorder %s23, 3
      %p108 = por %p106, %p107
      %p109 = scmp.ne.s32.totalorder %s101, %s104
      %p110 = scmp.eq.s32.totalorder %s23, 0
      %p111 = por %p109, %p110
      %p112 = scmp.ne.s32.totalorder %s101, %s104
      %p113 = scmp.eq.s32.totalorder %s28, 3
      %p114 = por %p112, %p113
      %p115 = scmp.ne.s32.totalorder %s104, %s105
      %p116 = scmp.eq.s32.totalorder %s28, 0
      %p117 = por %p115, %p116
      %p118 = scmp.ne.s32.totalorder %s104, %s105
      %p119 = scmp.eq.s32.totalorder %s29, 3
      %p120 = por %p118, %p119
      %p122 = scmp.ne.s32.totalorder %s105, %s121
      %p123 = scmp.eq.s32.totalorder %s29, 0
      %p124 = por %p122, %p123
      %s125 = ssub.s32 %s30, %s42
      %s126 = ssub.s32 %s31, %s38
      %s127 = sor.u32 %s125, %s126
      %p128 = scmp.eq.s32.totalorder %s127, 0
      %s130 = sadd.s32 %s129, 1
      %s131 = scalar_select %p128, %s129, %s130
      %p134 = pneg %p128
      %p135 = scmp.eq.s32.totalorder %s23, 3
      %p136 = por %p134, %p135
      %p137 = scmp.ne.s32.totalorder %s129, %s132
      %p138 = scmp.eq.s32.totalorder %s23, 0
      %p139 = por %p137, %p138
      %p140 = scmp.ne.s32.totalorder %s129, %s132
      %p141 = scmp.eq.s32.totalorder %s28, 3
      %p142 = por %p140, %p141
      %p143 = scmp.ne.s32.totalorder %s132, %s133
      %p144 = scmp.eq.s32.totalorder %s28, 0
      %p145 = por %p143, %p144
      %p146 = scmp.ne.s32.totalorder %s132, %s133
      %p147 = scmp.eq.s32.totalorder %s29, 3
      %p148 = por %p146, %p147
      %p150 = scmp.ne.s32.totalorder %s133, %s149
      %p151 = scmp.eq.s32.totalorder %s29, 0
      %p152 = por %p150, %p151
      %s153 = ssub.s32 %s30, %s42
      %s154 = ssub.s32 %s31, %s38
      %s155 = sor.u32 %s153, %s154
      %p156 = scmp.eq.s32.totalorder %s155, 0
      %s158 = sadd.s32 %s157, 1
      %s159 = scalar_select %p156, %s157, %s158
      %p162 = pneg %p156
      %p163 = scmp.eq.s32.totalorder %s23, 3
      %p164 = por %p162, %p163
      %p165 = scmp.ne.s32.totalorder %s157, %s160
      %p166 = scmp.eq.s32.totalorder %s23, 0
      %p167 = por %p165, %p166
      %p168 = scmp.ne.s32.totalorder %s157, %s160
      %p169 = scmp.eq.s32.totalorder %s28, 3
      %p170 = por %p168, %p169
      %p171 = scmp.ne.s32.totalorder %s160, %s161
      %p172 = scmp.eq.s32.totalorder %s28, 0
      %p173 = por %p171, %p172
      %p174 = scmp.ne.s32.totalorder %s160, %s161
      %p175 = scmp.eq.s32.totalorder %s29, 3
      %p176 = por %p174, %p175
      %p178 = scmp.ne.s32.totalorder %s161, %s177
      %p179 = scmp.eq.s32.totalorder %s29, 0
      %p180 = por %p178, %p179
      %p181 = scmp.le.s32.totalorder 1, %s23
      %p182 = scmp.lt.s32.totalorder %s23, 5
      %p183 = pnand %p181, %p182
      %p184 = pneg %p183
      // Predicated region
      $region9: #{tpu_custom_call.1} parent=5 // pred_check
        _
      $region10: #{tpu_custom_call.1} parent=5 // pred_check_branch
        %186 = sbr.rel (%p183) target = $region12
      $region11: #{tpu_custom_call.1} parent=5 // pred_region
        %s187 = ssub.s32 %s23, 1
      $region12: #{tpu_custom_call.1} parent=5 // pred_fallthru
        _
      %p188 = scmp.lt.s32.totalorder %s23, 4
      // Predicated region
      $region13: #{tpu_custom_call.1} parent=5 // pred_check
        %p189 = pneg %p188
      $region14: #{tpu_custom_call.1} parent=5 // pred_check_branch
        %191 = sbr.rel (%p189) target = $region16
      $region15: #{tpu_custom_call.1} parent=5 // pred_region
        // Predicated region
        $region17: #{tpu_custom_call.1} parent=15 // pred_check
          %p192 = pneg %p55
        $region18: #{tpu_custom_call.1} parent=15 // pred_check_branch
          %194 = sbr.rel (%p192) target = $region20
        $region19: #{tpu_custom_call.1} parent=15 // pred_region
          %s195 = sand.u32 %s45, 1
          %s196 = scalar_lea.sflag [#allocation3], %s195
          %s197 = sand.u32 %s45, 1
          %s198 = smul.addr %s197, 12
          %s199 = scalar_lea.vmem [#allocation2], %s198
          %201 = vsyncadd %s196, 0
          %s202 = smul.addr %s30, 3
          %s203 = smul.addr %s202, 4
          %s204 = scalar_lea.hbm %s0, %s203
          %s205 = sshll.u32 %s204, 4
          %s206 = int_to_ptr.hbm [resolvable:$true] %s205
          %s207 = sshll.u32 %s199, 4
          %s208 = int_to_ptr.vmem [resolvable:$true] %s207
          %213 = dma.hbm_to_vmem [thread:$0]  %s206, 192, %s208, %s196, 64, 64, 4
        $region20: #{tpu_custom_call.1} parent=15 // pred_fallthru
          _
        // Predicated region
        $region21: #{tpu_custom_call.1} parent=15 // pred_check
          %p214 = pneg %p83
        $region22: #{tpu_custom_call.1} parent=15 // pred_check_branch
          %216 = sbr.rel (%p214) target = $region24
        $region23: #{tpu_custom_call.1} parent=15 // pred_region
          %s217 = sand.u32 %s23, 1
          %s218 = scalar_lea.sflag [#allocation6], %s217
          %s219 = sand.u32 %s73, 1
          %s220 = smul.addr %s219, 48
          %s221 = scalar_lea.vmem [#allocation5], %s220
          %s222 = smul.u32 2, %s31
          %224 = vsyncadd %s218, 0
          %s225 = smul.addr %s30, 6
          %s226 = sadd.s32 %s222, %s225
          %s227 = smul.addr %s226, 8
          %s228 = scalar_lea.hbm %s1, %s227
          %s229 = sshll.u32 %s228, 4
          %s230 = int_to_ptr.hbm [resolvable:$true] %s229
          %s231 = sshll.u32 %s221, 4
          %s232 = int_to_ptr.vmem [resolvable:$true] %s231
          %237 = dma.hbm_to_vmem [thread:$0]  %s230, 768, %s232, %s218, 128, 128, 8
        $region24: #{tpu_custom_call.1} parent=15 // pred_fallthru
          _
        // Predicated region
        $region25: #{tpu_custom_call.1} parent=15 // pred_check
          %p238 = pneg %p111
        $region26: #{tpu_custom_call.1} parent=15 // pred_check_branch
          %240 = sbr.rel (%p238) target = $region28
        $region27: #{tpu_custom_call.1} parent=15 // pred_region
          %s241 = sand.u32 %s23, 1
          %s242 = scalar_lea.sflag [#allocation6], %s241
          %s243 = sand.u32 %s101, 1
          %s244 = smul.addr %s243, 48
          %s245 = scalar_lea.vmem [#allocation7], %s244
          %s246 = smul.u32 2, %s31
          %248 = vsyncadd %s242, 0
          %s249 = smul.addr %s30, 6
          %s250 = sadd.s32 %s246, %s249
          %s251 = smul.addr %s250, 8
          %s252 = scalar_lea.hbm %s2, %s251
          %s253 = sshll.u32 %s252, 4
          %s254 = int_to_ptr.hbm [resolvable:$true] %s253
          %s255 = sshll.u32 %s245, 4
          %s256 = int_to_ptr.vmem [resolvable:$true] %s255
          %261 = dma.hbm_to_vmem [thread:$0]  %s254, 768, %s256, %s242, 128, 128, 8
        $region28: #{tpu_custom_call.1} parent=15 // pred_fallthru
          _
      $region16: #{tpu_custom_call.1} parent=5 // pred_fallthru
        _
      %p262 = scmp.le.s32.totalorder 1, %s23
      %p263 = scmp.lt.s32.totalorder %s23, 5
      %p264 = pnand %p262, %p263
      %p265 = pneg %p264
      // Predicated region
      $region29: #{tpu_custom_call.1} parent=5 // pred_check
        _
      $region30: #{tpu_custom_call.1} parent=5 // pred_check_branch
        %267 = sbr.rel (%p264) target = $region32
      $region31: #{tpu_custom_call.1} parent=5 // pred_region
        %s268 = ssub.s32 %s23, 1
        %s269 = sand.u32 %s48, 1
        %s270 = scalar_lea.sflag [#allocation3], %s269
        %s271 = sand.u32 %s48, 1
        %s272 = smul.addr %s271, 12
        %s273 = scalar_lea.vmem [#allocation2], %s272
        // Predicated region
        $region33: #{tpu_custom_call.1} parent=31 // pred_check
          %p274 = pneg %p61
        $region34: #{tpu_custom_call.1} parent=31 // pred_check_branch
          %276 = sbr.rel (%p274) target = $region36
        $region35: #{tpu_custom_call.1} parent=31 // pred_region
          %278 = dma.done %s270, 192
        $region36: #{tpu_custom_call.1} parent=31 // pred_fallthru
          _
        %s279 = sand.u32 %s28, 1
        %s280 = scalar_lea.sflag [#allocation6], %s279
        %s281 = sand.u32 %s76, 1
        %s282 = smul.addr %s281, 48
        %s283 = scalar_lea.vmem [#allocation5], %s282
        // Predicated region
        $region37: #{tpu_custom_call.1} parent=31 // pred_check
          %p284 = pneg %p89
        $region38: #{tpu_custom_call.1} parent=31 // pred_check_branch
          %286 = sbr.rel (%p284) target = $region40
        $region39: #{tpu_custom_call.1} parent=31 // pred_region
          %288 = dma.done %s280, 768
        $region40: #{tpu_custom_call.1} parent=31 // pred_fallthru
          _
        %s289 = sand.u32 %s28, 1
        %s290 = scalar_lea.sflag [#allocation6], %s289
        %s291 = sand.u32 %s104, 1
        %s292 = smul.addr %s291, 48
        %s293 = scalar_lea.vmem [#allocation7], %s292
        // Predicated region
        $region41: #{tpu_custom_call.1} parent=31 // pred_check
          %p294 = pneg %p117
        $region42: #{tpu_custom_call.1} parent=31 // pred_check_branch
          %296 = sbr.rel (%p294) target = $region44
        $region43: #{tpu_custom_call.1} parent=31 // pred_region
          %298 = dma.done %s290, 768
        $region44: #{tpu_custom_call.1} parent=31 // pred_fallthru
          _
        %s299 = sand.u32 %s48, 1
        %s300 = scalar_lea.sflag [#allocation3], %s299
        %s301 = sand.u32 %s48, 1
        %s302 = smul.addr %s301, 12
        %s303 = scalar_lea.vmem [#allocation2], %s302
        %p304 = pneg %p61
        %p305 = pneg %p58
        %s306 = sand.u32 %s28, 1
        %s307 = scalar_lea.sflag [#allocation6], %s306
        %s308 = sand.u32 %s76, 1
        %s309 = smul.addr %s308, 48
        %s310 = scalar_lea.vmem [#allocation5], %s309
        %p311 = pneg %p89
        %p312 = pneg %p86
        %s313 = sand.u32 %s28, 1
        %s314 = scalar_lea.sflag [#allocation6], %s313
        %s315 = sand.u32 %s104, 1
        %s316 = smul.addr %s315, 48
        %s317 = scalar_lea.vmem [#allocation7], %s316
        %p318 = pneg %p117
        %p319 = pneg %p114
        %p320 = pneg %p145
        %p321 = pneg %p142
        %s322 = sand.u32 %s132, 1
        %s323 = scalar_lea.sflag [#allocation4], %s322
        %s324 = sand.u32 %s132, 1
        %s325 = smul.addr %s324, 16
        %s326 = scalar_lea.vmem [#allocation8], %s325
        %p327 = pneg %p173
        %p328 = pneg %p170
        %s329 = sand.u32 %s160, 1
        %s330 = scalar_lea.sflag [#allocation10], %s329
        %s331 = sand.u32 %s160, 1
        %s332 = smul.addr %s331, 48
        %s333 = scalar_lea.vmem [#allocation9], %s332
        %s334 = smul.u32 2, %s33
        %s335 = smul.u32 2, %s33
        %s336 = smul.u32 2, %s33
        %s337 = smul.u32 2, %s33
        %s338 = smul.u32 %s33, 16
        %s339 = sshra.s32 %s338, 3
        %s340 = sand.u32 %s338, 7
        %s341 = smul.addr %s339, 4
        %s342 = scalar_lea.vmem %s273, %s341 [#allocation2]
        %v343 = vld [vmem:[%s342] sm:$0xf]
        %v344 = vld [vmem:[%s342 + $0x4] sm:$0xf]
        %v345 = vld [vmem:[%s342 + $0x8] sm:$0xf]
        %v346 = vunpack.c.l.bf16 %v343
        %v347 = vunpack.c.l.bf16 %v344
        %v348 = vunpack.c.l.bf16 %v345
        %v349 = vrot.slane %v346, 1
        %v350 = vrot.slane %v347, 1
        %v351 = vrot.slane %v348, 1
        %v352 = vlaneseq
        %v353 = vshrl.u32 %v352, 7
        %vm354 = vcmp.lt.s32.totalorder %v353, 7
        %v355 = vsel %vm354, %v350, %v351
        %v356 = vsel %vm354, %v349, %v350
        %v357 = vsel %vm354, %v351, %v349
        %v358 = vmax.f32 %v346, %v356
        %v359 = vmax.f32 %v347, %v355
        %v360 = vmax.f32 %v348, %v357
        %v361 = vrot.slane %v358, 2
        %v362 = vrot.slane %v359, 2
        %v363 = vrot.slane %v360, 2
        %vm364 = vcmp.lt.s32.totalorder %v353, 6
        %v365 = vsel %vm364, %v362, %v363
        %v366 = vsel %vm364, %v361, %v362
        %v367 = vsel %vm364, %v363, %v361
        %v368 = vmax.f32 %v358, %v366
        %v369 = vmax.f32 %v359, %v365
        %v370 = vmax.f32 %v360, %v367
        %v371 = vrot.slane %v368, 1
        %v372 = vrot.slane %v369, 1
        %v373 = vrot.slane %v370, 1
        %v374 = vsel %vm354, %v372, %v373
        %v375 = vsel %vm354, %v371, %v372
        %v376 = vmax.f32 %v368, %v375
        %v377 = vmax.f32 %v369, %v374
        %378 = vrot.lane.b32.xlu0 %v376, 127
        %v379 = vpop.permute.xlu0 %378
        %380 = vrot.lane.b32.xlu0 %v377, 127
        %v381 = vpop.permute.xlu0 %380
        %v382 = vmax.f32 %v376, %v379
        %v383 = vmax.f32 %v377, %v381
        %384 = vrot.lane.b32.xlu0 %v382, 126
        %v385 = vpop.permute.xlu0 %384
        %386 = vrot.lane.b32.xlu0 %v383, 126
        %v387 = vpop.permute.xlu0 %386
        %v388 = vmax.f32 %v382, %v385
        %v389 = vmax.f32 %v383, %v387
        %390 = vrot.lane.b32.xlu0 %v388, 127
        %v391 = vpop.permute.xlu0 %390
        %392 = vrot.lane.b32.xlu0 %v389, 127
        %v393 = vpop.permute.xlu0 %392
        %v394 = vmax.f32 %v388, %v391
        %v395 = vmax.f32 %v389, %v393
        %396 = vst [vmem:[%s326] sm:$0xff] %v394
        %397 = vst [vmem:[%s326 + $0x8] sm:$0xff] %v395
        %vm398 = vcmp.gt.f32.partialorder %v394, 0.0
        %vm399 = vcmp.gt.f32.partialorder %v395, 0.0
        %v400 = vld [vmem:[%s293] sm:$0xff]
        %v401 = vld [vmem:[%s293 + $0x8] sm:$0xff]
        %v402 = vld [vmem:[%s283] sm:$0xff]
        %v403 = vld [vmem:[%s283 + $0x8] sm:$0xff]
        %v404 = vsel %vm398, %v400, %v402
        %v405 = vsel %vm399, %v401, %v403
        %406 = vst [vmem:[%s333] sm:$0xff] %v404
        %407 = vst [vmem:[%s333 + $0x8] sm:$0xff] %v405
        %s408 = scalar_lea.vmem %s293, 16 [#allocation7]
        %v409 = vld [vmem:[%s408] sm:$0xff]
        %v410 = vld [vmem:[%s408 + $0x8] sm:$0xff]
        %s411 = scalar_lea.vmem %s283, 16 [#allocation5]
        %v412 = vld [vmem:[%s411] sm:$0xff]
        %v413 = vld [vmem:[%s411 + $0x8] sm:$0xff]
        %v414 = vsel %vm398, %v409, %v412
        %v415 = vsel %vm399, %v410, %v413
        %s416 = scalar_lea.vmem %s333, 16 [#allocation9]
        %417 = vst [vmem:[%s416] sm:$0xff] %v414
        %418 = vst [vmem:[%s416 + $0x8] sm:$0xff] %v415
        %s419 = scalar_lea.vmem %s293, 32 [#allocation7]
        %v420 = vld [vmem:[%s419] sm:$0xff]
        %v421 = vld [vmem:[%s419 + $0x8] sm:$0xff]
        %s422 = scalar_lea.vmem %s283, 32 [#allocation5]
        %v423 = vld [vmem:[%s422] sm:$0xff]
        %v424 = vld [vmem:[%s422 + $0x8] sm:$0xff]
        %v425 = vsel %vm398, %v420, %v423
        %v426 = vsel %vm399, %v421, %v424
        %s427 = scalar_lea.vmem %s333, 32 [#allocation9]
        %428 = vst [vmem:[%s427] sm:$0xff] %v425
        %429 = vst [vmem:[%s427 + $0x8] sm:$0xff] %v426
        %s430 = sand.u32 %s132, 1
        %s431 = scalar_lea.sflag [#allocation4], %s430
        %s432 = sand.u32 %s132, 1
        %s433 = smul.addr %s432, 16
        %s434 = scalar_lea.vmem [#allocation8], %s433
        %s435 = sand.u32 %s160, 1
        %s436 = scalar_lea.sflag [#allocation10], %s435
        %s437 = sand.u32 %s160, 1
        %s438 = smul.addr %s437, 48
        %s439 = scalar_lea.vmem [#allocation9], %s438
        // Predicated region
        $region45: #{tpu_custom_call.1} parent=31 // pred_check
          %p440 = pneg %p142
        $region46: #{tpu_custom_call.1} parent=31 // pred_check_branch
          %442 = sbr.rel (%p440) target = $region48
        $region47: #{tpu_custom_call.1} parent=31 // pred_region
          %s443 = smul.u32 2, %s33
          %445 = vsyncadd %s431, 0
          %s446 = smul.addr %s32, 2
          %s447 = sadd.s32 %s443, %s446
          %s448 = smul.addr %s447, 8
          %s449 = scalar_lea.hbm %s3, %s448
          %s450 = sshll.u32 %s434, 4
          %s451 = int_to_ptr.vmem [resolvable:$true] %s450
          %s452 = sshll.u32 %s449, 4
          %s453 = int_to_ptr.hbm [resolvable:$true] %s452
          %458 = dma.vmem_to_hbm [thread:$0]  %s451, 256, %s453, %s431, 128, 128, 8
        $region48: #{tpu_custom_call.1} parent=31 // pred_fallthru
          _
        // Predicated region
        $region49: #{tpu_custom_call.1} parent=31 // pred_check
          %p459 = pneg %p170
        $region50: #{tpu_custom_call.1} parent=31 // pred_check_branch
          %461 = sbr.rel (%p459) target = $region52
        $region51: #{tpu_custom_call.1} parent=31 // pred_region
          %s462 = smul.u32 2, %s33
          %464 = vsyncadd %s436, 0
          %s465 = smul.addr %s32, 6
          %s466 = sadd.s32 %s462, %s465
          %s467 = smul.addr %s466, 8
          %s468 = scalar_lea.hbm %s4, %s467
          %s469 = sshll.u32 %s439, 4
          %s470 = int_to_ptr.vmem [resolvable:$true] %s469
          %s471 = sshll.u32 %s468, 4
          %s472 = int_to_ptr.hbm [resolvable:$true] %s471
          %477 = dma.vmem_to_hbm [thread:$0]  %s470, 768, %s472, %s436, 128, 128, 8
        $region52: #{tpu_custom_call.1} parent=31 // pred_fallthru
          _
      $region32: #{tpu_custom_call.1} parent=5 // pred_fallthru
        _
      %p478 = scmp.le.s32.totalorder 2, %s23
      // Predicated region
      $region53: #{tpu_custom_call.1} parent=5 // pred_check
        %p479 = pneg %p478
      $region54: #{tpu_custom_call.1} parent=5 // pred_check_branch
        %481 = sbr.rel (%p479) target = $region56
      $region55: #{tpu_custom_call.1} parent=5 // pred_region
        %s482 = ssub.s32 %s23, 2
        // Predicated region
        $region57: #{tpu_custom_call.1} parent=55 // pred_check
          %p483 = pneg %p148
        $region58: #{tpu_custom_call.1} parent=55 // pred_check_branch
          %485 = sbr.rel (%p483) target = $region60
        $region59: #{tpu_custom_call.1} parent=55 // pred_region
          %s486 = sand.u32 %s133, 1
          %s487 = scalar_lea.sflag [#allocation4], %s486
          %s488 = sand.u32 %s133, 1
          %s489 = smul.addr %s488, 16
          %s490 = scalar_lea.vmem [#allocation8], %s489
          %492 = dma.done %s487, 256
        $region60: #{tpu_custom_call.1} parent=55 // pred_fallthru
          _
        // Predicated region
        $region61: #{tpu_custom_call.1} parent=55 // pred_check
          %p493 = pneg %p176
        $region62: #{tpu_custom_call.1} parent=55 // pred_check_branch
          %495 = sbr.rel (%p493) target = $region64
        $region63: #{tpu_custom_call.1} parent=55 // pred_region
          %s496 = sand.u32 %s161, 1
          %s497 = scalar_lea.sflag [#allocation10], %s496
          %s498 = sand.u32 %s161, 1
          %s499 = smul.addr %s498, 48
          %s500 = scalar_lea.vmem [#allocation9], %s499
          %502 = dma.done %s497, 768
        $region64: #{tpu_custom_call.1} parent=55 // pred_fallthru
          _
      $region56: #{tpu_custom_call.1} parent=5 // pred_fallthru
        _
    $region6: #{tpu_custom_call.1} parent=1 // loop_footer
      %s27 = sadd.s32 1, %s23
    $region7: #{tpu_custom_call.1} parent=1 // loop_footer_branch
      %22 = sbr.rel target = $region3
    $region8: #{tpu_custom_call.1} parent=1 // loop_exit
      _
    %503 = vsyncpa [#allocation3], 1
    %s504 = scalar_lea.sflag [#allocation3], 1
    %505 = vsyncpa %s504, 1
    %506 = vsyncpa [#allocation6], 1
    %s507 = scalar_lea.sflag [#allocation6], 1
    %508 = vsyncpa %s507, 1
    %509 = vsyncpa [#allocation4], 1
    %s510 = scalar_lea.sflag [#allocation4], 1
    %511 = vsyncpa %s510, 1
    %512 = vsyncpa [#allocation10], 1
    %s513 = scalar_lea.sflag [#allocation10], 1
    %514 = vsyncpa %s513, 1

</llo_original>
